<compile_context>
chip_gen: v7x
topology: tpu7x:2x2x1
jax: 0.10.0
libtpu: 0.0.40
codegen_flags: <defaults>
</compile_context>

<pallas_src>
import functools

import jax
import jax.numpy as jnp
from jax.experimental import pallas as pl
from jax.experimental.pallas import tpu as pltpu


def _round_up(a, b):
    return ((a + b - 1) // b) * b


def _round_down(a, b):
    return (a // b) * b


def _time2sin_kernel(*refs, fun_type, pack, has_shift):
    # refs (has_shift):  x (t,pack) | freqmat (pack, pack*H) | shift (1, pack*H) | out (t, pack*H)
    # refs (no shift) :  x (t,pack) | freqmat (pack, pack*H) |                     out (t, pack*H)
    if has_shift:
        x_ref, freq_ref, shift_ref, out_ref = refs
    else:
        x_ref, freq_ref, out_ref = refs
        shift_ref = None

    x = x_ref[...]          # (t, pack)  f32
    fm = freq_ref[...]      # (pack, pack*H) f32, fm[j, j*H+m] = freq[m], 0 elsewhere

    # Lane-dense phase on the VPU: phase[r, j*H+m] = x[r, j] * freq[m].
    phase = x[:, 0:1] * fm[0:1, :]
    for j in range(1, pack):
        phase = phase + x[:, j:j + 1] * fm[j:j + 1, :]

    if fun_type == "mixed":
        # cos(p) == sin(p + pi/2); the pi/2 offset for the first half of the
        # hidden dim (and the optional phase_emb, applied BEFORE the trig as
        # in the torch reference) is pre-folded into `shift`.
        enc = jnp.sin(phase + shift_ref[...])
    elif fun_type == "cos":
        enc = jnp.cos(phase)
        if has_shift:
            enc = enc + shift_ref[...]          # shift added AFTER the trig
    elif fun_type == "sin":
        enc = jnp.sin(phase)
        if has_shift:
            enc = enc + shift_ref[...]          # shift added AFTER the trig
    else:
        raise ValueError(f"unsupported fun_type: {fun_type!r}")

    out_ref[...] = enc.astype(out_ref.dtype)


def time2sin_forward(x, frequency_emb, phase_emb=None, *, fun_type="sin",
                     out_dtype=jnp.float32, target_block_elems=512 * 1024):
    """Pallas forward for Time2Sin: returns x.shape + (hidden,) in out_dtype."""
    if fun_type not in ("sin", "cos", "mixed"):
        raise ValueError(f"unsupported fun_type: {fun_type!r}")

    orig_shape = tuple(x.shape)
    h = int(frequency_emb.shape[0])
    add_phase_shift = phase_emb is not None

    xf = jnp.reshape(x, (-1,)).astype(jnp.float32)
    n = int(xf.shape[0])

    # Lane-dense packing factor: put `pack` consecutive time values in one
    # 128-lane output row whenever H divides 128 (and n divides evenly, so no
    # post-kernel slice/copy is ever needed).
    if 0 < h < 128 and 128 % h == 0 and n % (128 // h) == 0:
        pack = 128 // h
    else:
        pack = 1
    rows = n // pack
    lanes = pack * h

    x2 = xf.reshape(rows, pack)
    freq_row = frequency_emb.astype(jnp.float32).reshape(1, h)
    # freqmat[j, j'*h + m] = freq[m] if j == j' else 0  (tiny, VMEM-resident)
    freqmat = jnp.kron(jnp.eye(pack, dtype=jnp.float32), freq_row)

    has_shift = (fun_type == "mixed") or add_phase_shift
    operands = [x2, freqmat]
    if has_shift:
        pe = (phase_emb.astype(jnp.float32).reshape(h)
              if add_phase_shift else jnp.zeros((h,), jnp.float32))
        if fun_type == "mixed":
            # fold cos->sin phase offset for the first half of the hidden dim
            pe = pe + jnp.where(jnp.arange(h) < h // 2,
                                jnp.pi / 2, 0.0).astype(jnp.float32)
        operands.append(jnp.tile(pe.reshape(1, h), (1, pack)))

    # Tile sizing: ~2 MiB (f32) output blocks, multiple of 8 rows, keep the
    # grid >= 2 steps when there is enough work (v7x megacore sharding).
    t = max(8, _round_down(target_block_elems // lanes, 8))
    if rows >= 16:
        t = min(t, _round_up(pl.cdiv(rows, 2), 8))
    if t >= rows:
        t = rows                     # single full-extent block (always legal)
    grid = pl.cdiv(rows, t)          # ragged trailing block masked by Pallas

    in_specs = [
        pl.BlockSpec((t, pack), lambda i: (i, 0)),       # streamed x tile
        pl.BlockSpec((pack, lanes), lambda i: (0, 0)),   # resident freq expansion
    ]
    if has_shift:
        in_specs.append(pl.BlockSpec((1, lanes), lambda i: (0, 0)))  # resident shift

    kernel = functools.partial(_time2sin_kernel, fun_type=fun_type,
                               pack=pack, has_shift=has_shift)

    out = pl.pallas_call(
        kernel,
        out_shape=jax.ShapeDtypeStruct((rows, lanes), out_dtype),
        grid_spec=pltpu.PrefetchScalarGridSpec(
            num_scalar_prefetch=0,
            grid=(grid,),
            in_specs=in_specs,
            out_specs=pl.BlockSpec((t, lanes), lambda i: (i, 0)),
        ),
        compiler_params=pltpu.CompilerParams(
            dimension_semantics=("parallel",),
            vmem_limit_bytes=32 * 1024 * 1024,
        ),
    )(*operands)

    # (rows, pack*h) row-major is bit-identical to (n, h) row-major: free reshape.
    return out.reshape(*orig_shape, h)


class Time2Sin:
    """JAX/Pallas port of the PyTorch Time2Sin module."""

    def __init__(self, hidden_size, fun_type="sin", add_phase_shift=False, *, key=None):
        if key is None:
            key = jax.random.PRNGKey(0)
        kf, kp = jax.random.split(key)
        # The PyTorch module leaves the parameters uninitialized; use N(0,1)
        # here for deterministic, finite values.
        self.frequency_emb = jax.random.normal(kf, (hidden_size,), dtype=jnp.float32)
        self.phase_emb = (jax.random.normal(kp, (hidden_size,), dtype=jnp.float32)
                          if add_phase_shift else None)
        self.fun_type = fun_type
        self.add_phase_shift = add_phase_shift
        self.hidden_size = hidden_size

    def __call__(self, x, word=None):
        return time2sin_forward(x, self.frequency_emb, self.phase_emb,
                                fun_type=self.fun_type)

    def save_embeddings(self):
        if self.add_phase_shift:
            return (jax.device_get(self.frequency_emb), jax.device_get(self.phase_emb))
        return jax.device_get(self.frequency_emb)


def _time2sin_ref(x, freq, pe, fun_type, add_phase_shift):
    """Pure-JAX reference mirroring the PyTorch forward.

    # TODO(synk): the original 'mixed' branch slices phase[:, :H//2] on dim 1,
    # which equals a last-dim (hidden) slice only for 1-D x; this port slices
    # the hidden dim for any x rank.
    """
    phase = x[..., None].astype(jnp.float32) * freq
    h = freq.shape[0]
    if fun_type == "mixed":
        if add_phase_shift:
            phase = phase + pe
        return jnp.concatenate(
            [jnp.cos(phase[..., :h // 2]), jnp.sin(phase[..., h // 2:])], axis=-1)
    if fun_type == "cos":
        enc = jnp.cos(phase)
    elif fun_type == "sin":
        enc = jnp.sin(phase)
    else:
        raise ValueError(fun_type)
    if add_phase_shift:
        enc = enc + pe
    return enc


if __name__ == "__main__":
    key = jax.random.PRNGKey(0)
    k_model, k_x, k_x3 = jax.random.split(key, 3)

    hidden = 32
    batch, seq = 2, 8
    x = jax.random.uniform(k_x, (batch, seq), minval=0.0, maxval=10.0,
                           dtype=jnp.float32)

    # Case 1: sin + phase shift (lane-dense packed path, pack = 128//32 = 4).
    m1 = Time2Sin(hidden, fun_type="sin", add_phase_shift=True, key=k_model)
    y1 = m1(x)
    jax.block_until_ready(y1)
    ref1 = _time2sin_ref(x, m1.frequency_emb, m1.phase_emb, "sin", True)
    assert y1.shape == (batch, seq, hidden), y1.shape
    assert y1.dtype == jnp.float32
    assert jnp.allclose(y1, ref1, atol=1e-4, rtol=1e-4), \
        float(jnp.max(jnp.abs(y1 - ref1)))

    # Case 2: mixed (single-trig sin(x+pi/2) trick), no shift, packed path.
    m2 = Time2Sin(hidden, fun_type="mixed", add_phase_shift=False, key=k_model)
    y2 = m2(x)
    jax.block_until_ready(y2)
    ref2 = _time2sin_ref(x, m2.frequency_emb, None, "mixed", False)
    assert y2.shape == (batch, seq, hidden), y2.shape
    assert jnp.allclose(y2, ref2, atol=1e-4, rtol=1e-4), \
        float(jnp.max(jnp.abs(y2 - ref2)))

    # Case 3: cos, no shift, ragged 1-D length (n % pack != 0 -> unpacked
    # fallback + masked ragged trailing block, no pad / post-slice copy).
    x3 = jax.random.uniform(k_x3, (13,), minval=0.0, maxval=5.0, dtype=jnp.float32)
    m3 = Time2Sin(hidden, fun_type="cos", add_phase_shift=False, key=k_model)
    y3 = m3(x3)
    jax.block_until_ready(y3)
    ref3 = _time2sin_ref(x3, m3.frequency_emb, None, "cos", False)
    assert y3.shape == (13, hidden), y3.shape
    assert jnp.allclose(y3, ref3, atol=1e-4, rtol=1e-4), \
        float(jnp.max(jnp.abs(y3 - ref3)))

    print("KERNEL_OK")
</pallas_src>

<mosaic_0001>
module attributes {stable_mosaic.version = 11 : i64} {
  func.func @_time2sin_kernel(%arg0: i32, %arg1: memref<4x4xf32, #tpu.memory_space<vmem>>, %arg2: memref<4x128xf32, #tpu.memory_space<vmem>>, %arg3: memref<1x128xf32, #tpu.memory_space<vmem>>, %arg4: memref<4x128xf32, #tpu.memory_space<vmem>>) attributes {dimension_semantics = [#tpu.dimension_semantics<parallel>], iteration_bounds = array<i64: 1>, scalar_prefetch = 0 : i64, scratch_operands = 0 : i64, tpu.core_type = #tpu.core_type<tc>, window_params = [{transform_indices = @transform_0, window_bounds = array<i64: 4, 4>}, {pipeline_mode = #tpu.pipeline_mode<synchronous>, transform_indices = @transform_1, window_bounds = array<i64: 4, 128>}, {pipeline_mode = #tpu.pipeline_mode<synchronous>, transform_indices = @transform_2, window_bounds = array<i64: 1, 128>}, {transform_indices = @transform_3, window_bounds = array<i64: 4, 128>}]} {
    %c0 = arith.constant 0 : index
    %c0_0 = arith.constant 0 : index
    %0 = vector.load %arg1[%c0, %c0_0] : memref<4x4xf32, #tpu.memory_space<vmem>>, vector<4x4xf32>
    %c0_1 = arith.constant 0 : index
    %c0_2 = arith.constant 0 : index
    %1 = vector.load %arg2[%c0_1, %c0_2] : memref<4x128xf32, #tpu.memory_space<vmem>>, vector<4x128xf32>
    %2 = vector.extract_strided_slice %0 {offsets = [0, 0], sizes = [4, 1], strides = [1, 1]} : vector<4x4xf32> to vector<4x1xf32>
    %3 = vector.extract_strided_slice %1 {offsets = [0, 0], sizes = [1, 128], strides = [1, 1]} : vector<4x128xf32> to vector<1x128xf32>
    %4 = vector.broadcast %2 : vector<4x1xf32> to vector<4x128xf32>
    %5 = vector.broadcast %3 : vector<1x128xf32> to vector<4x128xf32>
    %6 = arith.mulf %4, %5 : vector<4x128xf32>
    %7 = vector.extract_strided_slice %0 {offsets = [0, 1], sizes = [4, 1], strides = [1, 1]} : vector<4x4xf32> to vector<4x1xf32>
    %8 = vector.extract_strided_slice %1 {offsets = [1, 0], sizes = [1, 128], strides = [1, 1]} : vector<4x128xf32> to vector<1x128xf32>
    %9 = vector.broadcast %7 : vector<4x1xf32> to vector<4x128xf32>
    %10 = vector.broadcast %8 : vector<1x128xf32> to vector<4x128xf32>
    %11 = arith.mulf %9, %10 : vector<4x128xf32>
    %12 = arith.addf %6, %11 : vector<4x128xf32>
    %13 = vector.extract_strided_slice %0 {offsets = [0, 2], sizes = [4, 1], strides = [1, 1]} : vector<4x4xf32> to vector<4x1xf32>
    %14 = vector.extract_strided_slice %1 {offsets = [2, 0], sizes = [1, 128], strides = [1, 1]} : vector<4x128xf32> to vector<1x128xf32>
    %15 = vector.broadcast %13 : vector<4x1xf32> to vector<4x128xf32>
    %16 = vector.broadcast %14 : vector<1x128xf32> to vector<4x128xf32>
    %17 = arith.mulf %15, %16 : vector<4x128xf32>
    %18 = arith.addf %12, %17 : vector<4x128xf32>
    %19 = vector.extract_strided_slice %0 {offsets = [0, 3], sizes = [4, 1], strides = [1, 1]} : vector<4x4xf32> to vector<4x1xf32>
    %20 = vector.extract_strided_slice %1 {offsets = [3, 0], sizes = [1, 128], strides = [1, 1]} : vector<4x128xf32> to vector<1x128xf32>
    %21 = vector.broadcast %19 : vector<4x1xf32> to vector<4x128xf32>
    %22 = vector.broadcast %20 : vector<1x128xf32> to vector<4x128xf32>
    %23 = arith.mulf %21, %22 : vector<4x128xf32>
    %24 = arith.addf %18, %23 : vector<4x128xf32>
    %25 = math.sin %24 : vector<4x128xf32>
    %c0_3 = arith.constant 0 : index
    %c0_4 = arith.constant 0 : index
    %26 = vector.load %arg3[%c0_3, %c0_4] : memref<1x128xf32, #tpu.memory_space<vmem>>, vector<1x128xf32>
    %27 = vector.broadcast %26 : vector<1x128xf32> to vector<4x128xf32>
    %28 = arith.addf %25, %27 : vector<4x128xf32>
    %c0_5 = arith.constant 0 : index
    %c0_6 = arith.constant 0 : index
    %29 = vector.load %arg4[%c0_5, %c0_6] : memref<4x128xf32, #tpu.memory_space<vmem>>, vector<4x128xf32>
    tpu.vector_store %arg4[%c0_5, %c0_6], %28 {strides = array<i32>} : memref<4x128xf32, #tpu.memory_space<vmem>>, vector<4x128xf32>,
    return
  }
  func.func @transform_0(%arg0: i32) -> (i32, i32) {
    %c0_i32 = arith.constant 0 : i32
    %c0_i32_0 = arith.constant 0 : i32
    return %arg0, %c0_i32 : i32, i32
  }
  func.func @transform_1(%arg0: i32) -> (i32, i32) {
    %c0_i32 = arith.constant 0 : i32
    %c0_i32_0 = arith.constant 0 : i32
    %c0_i32_1 = arith.constant 0 : i32
    return %c0_i32, %c0_i32_0 : i32, i32
  }
  func.func @transform_2(%arg0: i32) -> (i32, i32) {
    %c0_i32 = arith.constant 0 : i32
    %c0_i32_0 = arith.constant 0 : i32
    %c0_i32_1 = arith.constant 0 : i32
    return %c0_i32, %c0_i32_0 : i32, i32
  }
  func.func @transform_3(%arg0: i32) -> (i32, i32) {
    %c0_i32 = arith.constant 0 : i32
    %c0_i32_0 = arith.constant 0 : i32
    return %arg0, %c0_i32 : i32, i32
  }
}

</mosaic_0001>

<llo_original>
// kernel: tpu_custom_call.1
$region0: #{tpu_custom_call.1}
  #allocation0 [shape = 'u32[]', space=smem, size = 0x4, offset = 0x4, fixed_abs, tag = 'smem constant byte address 0x4 - core index']
  #allocation1 [shape = 'u32[144,128]{1,0:T(1,128)}', space=vmem, size = 0x12000, scoped, tag = 'internal scratch']
  %s0 = inlined_call_operand.hbm [shape: f32[4,4], index: 0, kind: input, shape index: {}]
  %s1 = inlined_call_operand.hbm [shape: f32[4,128], index: 1, kind: input, shape index: {}]
  %s2 = inlined_call_operand.vmem [shape: f32[1,128], index: 2, kind: input, shape index: {}]
  %s3 = inlined_call_operand.hbm [shape: f32[4,128], index: 3, kind: output, shape index: {}]
  %s4 = sld [smem:[#allocation0]]
  $region30: #{tpu_custom_call.1} parent=0
    _
  %s6 = ssub.s32 1, %s4
  %s7 = scalar_select 0, %s6, %s4
  $region1: #{tpu_custom_call.1} parent=0
    #allocation2 [shape = 'u8[2048]{0}', space=vmem, size = 0x800, scoped, tag = 'input window, operand 0, single buffered']
    #allocation3 [shape = 's32[1]{0}', space=sflag, size = 0x4, scoped, tag = 'scoped memory for tpu_custom_call.1']
    #allocation4 [shape = 's32[1]{0}', space=sflag, size = 0x4, scoped, tag = 'scoped memory for tpu_custom_call.1']
    #allocation5 [shape = 'u8[2048]{0}', space=vmem, size = 0x800, scoped, tag = 'input window, operand 1, single buffered']
    #allocation6 [shape = 's32[1]{0}', space=sflag, size = 0x4, scoped, tag = 'scoped memory for tpu_custom_call.1']
    #allocation7 [shape = 'u8[2048]{0}', space=vmem, size = 0x800, scoped, tag = 'output window, operand 0, single buffered']
    %8 = vsyncpa [#allocation3], 0
    %9 = vsyncpa [#allocation6], 0
    %10 = vsyncpa [#allocation4], 0
    // Predicated region
    $region2: #{tpu_custom_call.1} parent=1 // pred_check
      _
    $region3: #{tpu_custom_call.1} parent=1 // pred_check_branch
      %12 = sbr.rel (0) target = $region5
    $region4: #{tpu_custom_call.1} parent=1 // pred_region
      %s14 = ssub.s32 64, 64
      %15 = vsyncadd [#allocation3], %s14
      %s17 = sshll.u32 [#allocation2], 4
      %s18 = int_to_ptr.vmem [resolvable:$true] %s17
      %20 = dma.hbm_to_vmem [thread:$0]  %s0, 64, %s18, [#allocation3]
    $region5: #{tpu_custom_call.1} parent=1 // pred_fallthru
      _
    // Predicated region
    $region6: #{tpu_custom_call.1} parent=1 // pred_check
      _
    $region7: #{tpu_custom_call.1} parent=1 // pred_check_branch
      %22 = sbr.rel (0) target = $region9
    $region8: #{tpu_custom_call.1} parent=1 // pred_region
      %s24 = ssub.s32 64, 64
      %25 = vsyncadd [#allocation6], %s24
      %s27 = sshll.u32 [#allocation5], 4
      %s28 = int_to_ptr.vmem [resolvable:$true] %s27
      %30 = dma.hbm_to_vmem [thread:$0]  %s1, 64, %s28, [#allocation6]
    $region9: #{tpu_custom_call.1} parent=1 // pred_fallthru
      _
    // Predicated region
    $region10: #{tpu_custom_call.1} parent=1 // pred_check
      _
    $region11: #{tpu_custom_call.1} parent=1 // pred_check_branch
      %32 = sbr.rel (0) target = $region13
    $region12: #{tpu_custom_call.1} parent=1 // pred_region
      _
    $region13: #{tpu_custom_call.1} parent=1 // pred_fallthru
      _
    // Predicated region
    $region14: #{tpu_custom_call.1} parent=1 // pred_check
      _
    $region15: #{tpu_custom_call.1} parent=1 // pred_check_branch
      %34 = sbr.rel (0) target = $region17
    $region16: #{tpu_custom_call.1} parent=1 // pred_region
      %35 = dma.done [#allocation3], 64
    $region17: #{tpu_custom_call.1} parent=1 // pred_fallthru
      _
    // Predicated region
    $region18: #{tpu_custom_call.1} parent=1 // pred_check
      _
    $region19: #{tpu_custom_call.1} parent=1 // pred_check_branch
      %37 = sbr.rel (0) target = $region21
    $region20: #{tpu_custom_call.1} parent=1 // pred_region
      %38 = dma.done [#allocation6], 64
    $region21: #{tpu_custom_call.1} parent=1 // pred_fallthru
      _
    %v39 = vld [vmem:[#allocation2] sm:$0xf]
    %v40 = vld [vmem:[#allocation5] sm:$0xf]
    %42 = vset.pattern.permute.xlu0 0
    %43 = vperm.xlu0 %42, %v39
    %v44 = vpop.permute.xlu0 %43
    %v46 = vlaneseq
    %v47 = vshrl.u32 %v46, 7
    %v48 = vsub.s32 0, %v47
    %v49 = vrot.slane %v40, %v48
    %v50 = vmul.f32 %v44, %v49
    %51 = vset.pattern.permute.xlu0 1
    %52 = vperm.xlu0 %51, %v39
    %v53 = vpop.permute.xlu0 %52
    %v55 = vlaneseq
    %v56 = vshrl.u32 %v55, 7
    %v57 = vsub.s32 1, %v56
    %v58 = vrot.slane %v40, %v57
    %v59 = vmul.f32 %v53, %v58
    %v60 = vadd.f32 %v50, %v59
    %61 = vset.pattern.permute.xlu0 2
    %62 = vperm.xlu0 %61, %v39
    %v63 = vpop.permute.xlu0 %62
    %v65 = vlaneseq
    %v66 = vshrl.u32 %v65, 7
    %v67 = vsub.s32 2, %v66
    %v68 = vrot.slane %v40, %v67
    %v69 = vmul.f32 %v63, %v68
    %v70 = vadd.f32 %v60, %v69
    %71 = vset.pattern.permute.xlu0 3
    %72 = vperm.xlu0 %71, %v39
    %v73 = vpop.permute.xlu0 %72
    %v75 = vlaneseq
    %v76 = vshrl.u32 %v75, 7
    %v77 = vsub.s32 3, %v76
    %v78 = vrot.slane %v40, %v77
    %v79 = vmul.f32 %v73, %v78
    %v80 = vadd.f32 %v70, %v79
    %v81 = vand.u32 2147483647, %v80
    %vm82 = vcmp.le.f32.partialorder %v81, 0.7853982
    %vm83 = vcmp.lt.s32.totalorder %v80, 0
    %v84 = vand.u32 %v80, 2139095040
    %v85 = vshrl.u32 %v84, 23
    %v86 = vsub.s32 %v85, 127
    %v87 = vand.u32 2147483647, %v80
    %v88 = vand.u32 %v87, 8388607
    %v89 = vor.u32 %v88, 8388608
    %v90 = vsub.s32 0, %v89
    %v91 = vadd.s32 %v86, 1
    %vm92 = vcmp.gt.s32.totalorder %v91, 0
    %v93 = vsel %vm92, %v91, 0
    %v94 = vshrl.u32 %v93, 5
    %v95 = vand.u32 %v93, 31
    %v96 = vsub.s32 32, %v95
    %v97 = vshrl.u32 683565275, %v96
    %v98 = vshll.u32 683565275, %v95
    %v99 = vshrl.u32 2475754826, %v96
    %v100 = vor.u32 %v98, %v99
    %v101 = vshll.u32 2475754826, %v95
    %v102 = vshrl.u32 2131351028, %v96
    %v103 = vor.u32 %v101, %v102
    %v104 = vshll.u32 2131351028, %v95
    %v105 = vshrl.u32 2102212464, %v96
    %v106 = vor.u32 %v104, %v105
    %v107 = vshll.u32 2102212464, %v95
    %v108 = vshrl.u32 920167782, %v96
    %v109 = vor.u32 %v107, %v108
    %v110 = vshll.u32 920167782, %v95
    %v111 = vshrl.u32 1326507024, %v96
    %v112 = vor.u32 %v110, %v111
    %vm113 = vcmp.lt.s32.totalorder %v94, 1
    %vm114 = vcmp.lt.s32.totalorder %v94, 2
    %vm115 = vcmp.lt.s32.totalorder %v94, 3
    %vm116 = vcmp.lt.s32.totalorder %v94, 4
    %v117 = vsel %vm113, %v97, %v100
    %v118 = vsel %vm116, %v106, 2102212464
    %v119 = vsel %vm115, %v103, %v118
    %v120 = vsel %vm114, %v117, %v119
    %v121 = vsel %vm113, %v100, %v103
    %v122 = vsel %vm116, %v109, 920167782
    %v123 = vsel %vm115, %v106, %v122
    %v124 = vsel %vm114, %v121, %v123
    %v125 = vsel %vm113, %v103, %v106
    %v126 = vsel %vm116, %v112, 1326507024
    %v127 = vsel %vm115, %v109, %v126
    %v128 = vsel %vm114, %v125, %v127
    %v129 = vshll.u32 %v89, 8
    %v130 = vmul.u32.u64.compose %v129, %v128
    %v131 = vextract.low.u32 %v130
    %v132 = vextract.high.u32 %v130
    %v133 = vmul.u32.u64.compose %v129, %v124
    %v134 = vextract.low.u32 %v133
    %v135 = vextract.high.u32 %v133
    %v136 = vmul.u32 %v129, %v120
    %v137 = vadd.s32 %v132, %v134
    %vm138 = vc.u32 %v132, %v134
    %v139 = vadd.s32 %v135, 1
    %v140 = vsel %vm138, %v139, %v135
    %v141 = vadd.s32 %v136, %v140
    %v142 = vadd.s32 %v141, 536870912
    %v143 = vshrl.u32 %v142, 30
    %v144 = vshll.u32 %v143, 30
    %v145 = vsub.s32 %v141, %v144
    %vm146 = vcmp.lt.s32.totalorder %v145, 0
    %v147 = vsub.s32 0, %v145
    %v148 = vsel %vm146, %v147, %v145
    %v149 = vclz %v148
    %v150 = vsub.s32 %v149, 2
    %vm151 = vcmp.gt.s32.totalorder 0, %v150
    %v152 = vsel %vm151, 0, %v150
    %v153 = vsub.s32 32, %v152
    %v154 = vshll.u32 %v145, %v152
    %v155 = vshrl.u32 %v137, %v153
    %v156 = vor.u32 %v154, %v155
    %v157 = vsub.s32 4294967266, %v152
    %v158 = vadd.s32 %v157, 127
    %v159 = vshll.u32 %v158, 23
    %v160 = vor.u32 4788187, %v159
    %v161 = vand.u32 2147483647, %v160
    %v163 = vcvt.s32.f32 %v156
    %v164 = vmul.f32 %v163, %v161
    %v165 = vxor.u32 %v164, 2147483648
    %v166 = vsel %vm83, %v165, %v164
    %v167 = vsub.s32 4, %v143
    %v168 = vsel %vm83, %v167, %v143
    %v169 = vsel %vm82, %v80, %v166
    %v170 = vsel %vm82, 0, %v168
    %v171 = vcosq.f32.pop %v169
    %v172 = vsinq.f32.pop %v169
    %vm173 = vweird.f32 %v80
    %v174 = vadd.s32 %v170, 3
    %v175 = vand.u32 %v174, 3
    %vm176 = vcmp.lt.s32.totalorder %v175, 2
    %vm177 = vcmp.eq.s32.totalorder %v175, 0
    %v178 = vxor.u32 %v172, 2147483648
    %v179 = vsel %vm177, %v171, %v178
    %vm180 = vcmp.eq.s32.totalorder %v175, 2
    %v181 = vxor.u32 %v171, 2147483648
    %v182 = vsel %vm180, %v181, %v172
    %v183 = vsel %vm176, %v179, %v182
    %v184 = vsel %vm173, nan, %v183
    %v185 = vld [vmem:[%s2] sm:$0x1]
    %v187 = vlaneseq
    %v188 = vshrl.u32 %v187, 7
    %v189 = vsub.s32 0, %v188
    %v190 = vrot.slane %v185, %v189
    %v192 = vadd.f32 %v184, %v190
    %193 = vst [vmem:[#allocation7] sm:$0xf] %v192
    // Predicated region
    $region22: #{tpu_custom_call.1} parent=1 // pred_check
      _
    $region23: #{tpu_custom_call.1} parent=1 // pred_check_branch
      %195 = sbr.rel (0) target = $region25
    $region24: #{tpu_custom_call.1} parent=1 // pred_region
      %s197 = ssub.s32 64, 64
      %198 = vsyncadd [#allocation4], %s197
      %s200 = sshll.u32 [#allocation7], 4
      %s201 = int_to_ptr.vmem [resolvable:$true] %s200
      %203 = dma.vmem_to_hbm [thread:$0]  %s201, 64, %s3, [#allocation4]
    $region25: #{tpu_custom_call.1} parent=1 // pred_fallthru
      _
    // Predicated region
    $region26: #{tpu_custom_call.1} parent=1 // pred_check
      _
    $region27: #{tpu_custom_call.1} parent=1 // pred_check_branch
      %205 = sbr.rel (0) target = $region29
    $region28: #{tpu_custom_call.1} parent=1 // pred_region
      %206 = dma.done [#allocation4], 64
    $region29: #{tpu_custom_call.1} parent=1 // pred_fallthru
      _
    %207 = vsyncpa [#allocation3], 1
    %208 = vsyncpa [#allocation6], 1
    %209 = vsyncpa [#allocation4], 1

</llo_original>
